<compile_context>
chip_gen: v7x
topology: tpu7x:2x2x1
jax: 0.10.0
libtpu: 0.0.40
codegen_flags: <defaults>
</compile_context>

<pallas_src>
import jax
import jax.numpy as jnp
import numpy as np
from jax.experimental import pallas as pl
from jax.experimental.pallas import tpu as pltpu

_EPS = 1e-5
_LANE = 128


def _dice_bce_kernel(pred_ref, true_ref, out_ref, acc_ref):
    # pred_ref/true_ref: (CR, 128) chunk of one sample (sample dim squeezed).
    # out_ref:           (4, 8, 128) per-sample partials [bce, x*y, x, y], written once.
    # acc_ref:           (4, 8, 128) f32 VMEM accumulator, resident across chunks.
    j = pl.program_id(1)

    @pl.when(j == 0)
    def _():
        acc_ref[...] = jnp.zeros_like(acc_ref)

    x = pred_ref[...].astype(jnp.float32)          # raw logits
    y = true_ref[...].astype(jnp.float32)          # targets in [0, 1]

    # BCE(sigmoid(x), y) in logits form: softplus(x) - x*y
    xy = x * y
    bce = jnp.maximum(x, 0.0) - xy + jnp.log1p(jnp.exp(-jnp.abs(x)))

    # Fold (CR, 128) -> (8, 128) with vreg-wise VPU adds; defer the real reduction.
    br = bce.reshape(-1, 8, _LANE)
    tr = xy.reshape(-1, 8, _LANE)
    xr = x.reshape(-1, 8, _LANE)
    yr = y.reshape(-1, 8, _LANE)
    acc_ref[0] += jnp.sum(br, axis=0)
    acc_ref[1] += jnp.sum(tr, axis=0)
    acc_ref[2] += jnp.sum(xr, axis=0)
    acc_ref[3] += jnp.sum(yr, axis=0)

    @pl.when(j == pl.num_programs(1) - 1)
    def _():
        out_ref[...] = acc_ref[...]


def dice_bce_loss(y_pred, y_true):
    """y_pred, y_true: (N, C, H, W) arrays (any float dtype). Returns scalar loss."""
    N = y_pred.shape[0]
    F = int(np.prod(y_pred.shape[1:]))

    # Tile geometry: 128-wide lanes, chunked along the sublane axis.
    R = -(-F // _LANE)                          # rows of 128 needed
    CR = min(((R + 7) // 8) * 8, 1024)          # chunk rows: multiple of 8, <= 1024
    R_pad = ((R + CR - 1) // CR) * CR
    F_pad = R_pad * _LANE
    n_chunks = R_pad // CR

    pred = y_pred.reshape(N, F)                 # keep native dtype; cast inside kernel
    true = y_true.reshape(N, F)
    if F_pad != F:
        pred = jnp.pad(pred, ((0, 0), (0, F_pad - F)))
        true = jnp.pad(true, ((0, 0), (0, F_pad - F)))
    pred = pred.reshape(N, R_pad, _LANE)
    true = true.reshape(N, R_pad, _LANE)

    partials = pl.pallas_call(
        _dice_bce_kernel,
        out_shape=jax.ShapeDtypeStruct((N, 4, 8, _LANE), jnp.float32),
        grid=(N, n_chunks),
        in_specs=[
            pl.BlockSpec((None, CR, _LANE), lambda i, j: (i, j, 0)),
            pl.BlockSpec((None, CR, _LANE), lambda i, j: (i, j, 0)),
        ],
        out_specs=pl.BlockSpec((None, 4, 8, _LANE), lambda i, j: (i, 0, 0, 0)),
        scratch_shapes=[pltpu.VMEM((4, 8, _LANE), jnp.float32)],
        compiler_params=pltpu.CompilerParams(
            dimension_semantics=("parallel", "arbitrary")),
    )(pred, true)

    sums = jnp.sum(partials, axis=(2, 3))       # (N, 4): [bce_sum, tp, psum, gsum]

    # Remove the deterministic padding bias (log(2) per padded element, x=0,y=0).
    pad_bias = np.float32(N * (F_pad - F) * np.log(2.0))
    bce_mean = (jnp.sum(sums[:, 0]) - pad_bias) / (N * F)   # BCELoss reduction='mean'

    tp, psum, gsum = sums[:, 1], sums[:, 2], sums[:, 3]
    dice = (2.0 * tp + _EPS) / (psum + gsum + _EPS)         # raw-logit dice (module spec)
    return bce_mean + (1.0 - jnp.mean(dice))


def _reference(y_pred, y_true):
    # Pure-JAX reference mirroring the PyTorch module (clamped-log BCELoss path).
    N = y_pred.shape[0]
    x = y_pred.reshape(N, -1).astype(jnp.float32)
    y = y_true.reshape(N, -1).astype(jnp.float32)
    p = jax.nn.sigmoid(x)
    bce = -(y * jnp.maximum(jnp.log(p), -100.0)
            + (1.0 - y) * jnp.maximum(jnp.log1p(-p), -100.0))
    bce_mean = jnp.mean(bce)
    tp = jnp.sum(x * y, axis=1)
    dice = (2.0 * tp + _EPS) / (jnp.sum(x, axis=1) + jnp.sum(y, axis=1) + _EPS)
    return bce_mean + 1.0 - jnp.mean(dice)


if __name__ == "__main__":
    key = jax.random.PRNGKey(0)
    k1, k2 = jax.random.split(key)
    N, C, H, W = 2, 4, 16, 16
    y_pred = jax.random.normal(k1, (N, C, H, W), dtype=jnp.float32)
    y_true = jax.random.bernoulli(k2, 0.5, (N, C, H, W)).astype(jnp.float32)

    loss = jax.block_until_ready(dice_bce_loss(y_pred, y_true))
    ref = jax.block_until_ready(_reference(y_pred, y_true))
    assert jnp.isfinite(loss)
    # Kernel BCE is the logits form; differs from the clamped reference only for |x| > ~100.
    np.testing.assert_allclose(np.asarray(loss), np.asarray(ref), rtol=1e-4, atol=1e-4)
    print("KERNEL_OK")
</pallas_src>

<mosaic_0001>
module attributes {stable_mosaic.version = 11 : i64} {
  func.func @_dice_bce_kernel(%arg0: i32, %arg1: i32, %arg2: memref<1x8x128xf32, #tpu.memory_space<vmem>>, %arg3: memref<1x8x128xf32, #tpu.memory_space<vmem>>, %arg4: memref<1x4x8x128xf32, #tpu.memory_space<vmem>>, %arg5: memref<4x8x128xf32, #tpu.memory_space<vmem>>) attributes {dimension_semantics = [#tpu.dimension_semantics<parallel>, #tpu.dimension_semantics<arbitrary>], iteration_bounds = array<i64: 2, 1>, scalar_prefetch = 0 : i64, scratch_operands = 1 : i64, tpu.core_type = #tpu.core_type<tc>, window_params = [{transform_indices = @transform_0, window_bounds = array<i64: 1, 8, 128>}, {transform_indices = @transform_1, window_bounds = array<i64: 1, 8, 128>}, {transform_indices = @transform_2, window_bounds = array<i64: 1, 4, 8, 128>}]} {
    %c0_i32 = arith.constant 0 : i32
    %0 = arith.cmpi eq, %arg1, %c0_i32 : i32
    %1 = arith.extui %0 : i1 to i32
    %c0_i32_0 = arith.constant 0 : i32
    %2 = arith.cmpi ne, %1, %c0_i32_0 : i32
    scf.if %2 {
      %cst_34 = arith.constant 0.000000e+00 : f32
      %52 = vector.broadcast %cst_34 : f32 to vector<4x8x128xf32>
      %c0_35 = arith.constant 0 : index
      %c0_36 = arith.constant 0 : index
      %c0_37 = arith.constant 0 : index
      %53 = vector.load %arg5[%c0_35, %c0_36, %c0_37] : memref<4x8x128xf32, #tpu.memory_space<vmem>>, vector<4x8x128xf32>
      tpu.vector_store %arg5[%c0_35, %c0_36, %c0_37], %52 {strides = array<i32>} : memref<4x8x128xf32, #tpu.memory_space<vmem>>, vector<4x8x128xf32>,
    } else {
    }
    %c0 = arith.constant 0 : index
    %c0_1 = arith.constant 0 : index
    %c0_2 = arith.constant 0 : index
    %3 = vector.load %arg2[%c0, %c0_1, %c0_2] : memref<1x8x128xf32, #tpu.memory_space<vmem>>, vector<1x8x128xf32>
    %4 = vector.shape_cast %3 : vector<1x8x128xf32> to vector<8x128xf32>
    %c0_3 = arith.constant 0 : index
    %c0_4 = arith.constant 0 : index
    %c0_5 = arith.constant 0 : index
    %5 = vector.load %arg3[%c0_3, %c0_4, %c0_5] : memref<1x8x128xf32, #tpu.memory_space<vmem>>, vector<1x8x128xf32>
    %6 = vector.shape_cast %5 : vector<1x8x128xf32> to vector<8x128xf32>
    %7 = arith.mulf %4, %6 : vector<8x128xf32>
    %cst = arith.constant 0.000000e+00 : f32
    %8 = vector.broadcast %cst : f32 to vector<8x128xf32>
    %9 = arith.maximumf %4, %8 : vector<8x128xf32>
    %10 = arith.subf %9, %7 : vector<8x128xf32>
    %11 = math.absf %4 : vector<8x128xf32>
    %cst_6 = arith.constant 0.000000e+00 : f32
    %12 = vector.broadcast %cst_6 : f32 to vector<8x128xf32>
    %13 = arith.subf %12, %11 : vector<8x128xf32>
    %14 = math.exp %13 : vector<8x128xf32>
    %15 = math.log1p %14 : vector<8x128xf32>
    %16 = arith.addf %10, %15 : vector<8x128xf32>
    %17 = vector.shape_cast %16 : vector<8x128xf32> to vector<1x8x128xf32>
    %18 = vector.shape_cast %7 : vector<8x128xf32> to vector<1x8x128xf32>
    %19 = vector.shape_cast %4 : vector<8x128xf32> to vector<1x8x128xf32>
    %20 = vector.shape_cast %6 : vector<8x128xf32> to vector<1x8x128xf32>
    %c0_7 = arith.constant 0 : index
    %c0_8 = arith.constant 0 : index
    %c0_9 = arith.constant 0 : index
    %21 = vector.load %arg5[%c0_7, %c0_8, %c0_9] : memref<4x8x128xf32, #tpu.memory_space<vmem>>, vector<1x8x128xf32>
    %22 = vector.shape_cast %21 : vector<1x8x128xf32> to vector<8x128xf32>
    %cst_10 = arith.constant dense<0.000000e+00> : vector<8x128xf32>
    %23 = vector.multi_reduction <add>, %17, %cst_10 [0] : vector<1x8x128xf32> to vector<8x128xf32>
    %24 = arith.addf %22, %23 : vector<8x128xf32>
    %c0_11 = arith.constant 0 : index
    %c0_12 = arith.constant 0 : index
    %c0_13 = arith.constant 0 : index
    %25 = vector.load %arg5[%c0_11, %c0_12, %c0_13] : memref<4x8x128xf32, #tpu.memory_space<vmem>>, vector<1x8x128xf32>
    %26 = vector.shape_cast %25 : vector<1x8x128xf32> to vector<8x128xf32>
    %27 = vector.shape_cast %24 : vector<8x128xf32> to vector<1x8x128xf32>
    tpu.vector_store %arg5[%c0_11, %c0_12, %c0_13], %27 {strides = array<i32>} : memref<4x8x128xf32, #tpu.memory_space<vmem>>, vector<1x8x128xf32>,
    %c1 = arith.constant 1 : index
    %c0_14 = arith.constant 0 : index
    %c0_15 = arith.constant 0 : index
    %28 = vector.load %arg5[%c1, %c0_14, %c0_15] : memref<4x8x128xf32, #tpu.memory_space<vmem>>, vector<1x8x128xf32>
    %29 = vector.shape_cast %28 : vector<1x8x128xf32> to vector<8x128xf32>
    %cst_16 = arith.constant dense<0.000000e+00> : vector<8x128xf32>
    %30 = vector.multi_reduction <add>, %18, %cst_16 [0] : vector<1x8x128xf32> to vector<8x128xf32>
    %31 = arith.addf %29, %30 : vector<8x128xf32>
    %c1_17 = arith.constant 1 : index
    %c0_18 = arith.constant 0 : index
    %c0_19 = arith.constant 0 : index
    %32 = vector.load %arg5[%c1_17, %c0_18, %c0_19] : memref<4x8x128xf32, #tpu.memory_space<vmem>>, vector<1x8x128xf32>
    %33 = vector.shape_cast %32 : vector<1x8x128xf32> to vector<8x128xf32>
    %34 = vector.shape_cast %31 : vector<8x128xf32> to vector<1x8x128xf32>
    tpu.vector_store %arg5[%c1_17, %c0_18, %c0_19], %34 {strides = array<i32>} : memref<4x8x128xf32, #tpu.memory_space<vmem>>, vector<1x8x128xf32>,
    %c2 = arith.constant 2 : index
    %c0_20 = arith.constant 0 : index
    %c0_21 = arith.constant 0 : index
    %35 = vector.load %arg5[%c2, %c0_20, %c0_21] : memref<4x8x128xf32, #tpu.memory_space<vmem>>, vector<1x8x128xf32>
    %36 = vector.shape_cast %35 : vector<1x8x128xf32> to vector<8x128xf32>
    %cst_22 = arith.constant dense<0.000000e+00> : vector<8x128xf32>
    %37 = vector.multi_reduction <add>, %19, %cst_22 [0] : vector<1x8x128xf32> to vector<8x128xf32>
    %38 = arith.addf %36, %37 : vector<8x128xf32>
    %c2_23 = arith.constant 2 : index
    %c0_24 = arith.constant 0 : index
    %c0_25 = arith.constant 0 : index
    %39 = vector.load %arg5[%c2_23, %c0_24, %c0_25] : memref<4x8x128xf32, #tpu.memory_space<vmem>>, vector<1x8x128xf32>
    %40 = vector.shape_cast %39 : vector<1x8x128xf32> to vector<8x128xf32>
    %41 = vector.shape_cast %38 : vector<8x128xf32> to vector<1x8x128xf32>
    tpu.vector_store %arg5[%c2_23, %c0_24, %c0_25], %41 {strides = array<i32>} : memref<4x8x128xf32, #tpu.memory_space<vmem>>, vector<1x8x128xf32>,
    %c3 = arith.constant 3 : index
    %c0_26 = arith.constant 0 : index
    %c0_27 = arith.constant 0 : index
    %42 = vector.load %arg5[%c3, %c0_26, %c0_27] : memref<4x8x128xf32, #tpu.memory_space<vmem>>, vector<1x8x128xf32>
    %43 = vector.shape_cast %42 : vector<1x8x128xf32> to vector<8x128xf32>
    %cst_28 = arith.constant dense<0.000000e+00> : vector<8x128xf32>
    %44 = vector.multi_reduction <add>, %20, %cst_28 [0] : vector<1x8x128xf32> to vector<8x128xf32>
    %45 = arith.addf %43, %44 : vector<8x128xf32>
    %c3_29 = arith.constant 3 : index
    %c0_30 = arith.constant 0 : index
    %c0_31 = arith.constant 0 : index
    %46 = vector.load %arg5[%c3_29, %c0_30, %c0_31] : memref<4x8x128xf32, #tpu.memory_space<vmem>>, vector<1x8x128xf32>
    %47 = vector.shape_cast %46 : vector<1x8x128xf32> to vector<8x128xf32>
    %48 = vector.shape_cast %45 : vector<8x128xf32> to vector<1x8x128xf32>
    tpu.vector_store %arg5[%c3_29, %c0_30, %c0_31], %48 {strides = array<i32>} : memref<4x8x128xf32, #tpu.memory_space<vmem>>, vector<1x8x128xf32>,
    %c0_i32_32 = arith.constant 0 : i32
    %49 = arith.cmpi eq, %arg1, %c0_i32_32 : i32
    %50 = arith.extui %49 : i1 to i32
    %c0_i32_33 = arith.constant 0 : i32
    %51 = arith.cmpi ne, %50, %c0_i32_33 : i32
    scf.if %51 {
      %c0_34 = arith.constant 0 : index
      %c0_35 = arith.constant 0 : index
      %c0_36 = arith.constant 0 : index
      %52 = vector.load %arg5[%c0_34, %c0_35, %c0_36] : memref<4x8x128xf32, #tpu.memory_space<vmem>>, vector<4x8x128xf32>
      %c0_37 = arith.constant 0 : index
      %c0_38 = arith.constant 0 : index
      %c0_39 = arith.constant 0 : index
      %c0_40 = arith.constant 0 : index
      %53 = vector.load %arg4[%c0_37, %c0_38, %c0_39, %c0_40] : memref<1x4x8x128xf32, #tpu.memory_space<vmem>>, vector<1x4x8x128xf32>
      %54 = vector.shape_cast %53 : vector<1x4x8x128xf32> to vector<4x8x128xf32>
      %55 = vector.shape_cast %52 : vector<4x8x128xf32> to vector<1x4x8x128xf32>
      tpu.vector_store %arg4[%c0_37, %c0_38, %c0_39, %c0_40], %55 {strides = array<i32>} : memref<1x4x8x128xf32, #tpu.memory_space<vmem>>, vector<1x4x8x128xf32>,
    } else {
    }
    return
  }
  func.func @transform_0(%arg0: i32, %arg1: i32) -> (i32, i32, i32) {
    %c0_i32 = arith.constant 0 : i32
    %c0_i32_0 = arith.constant 0 : i32
    return %arg0, %arg1, %c0_i32 : i32, i32, i32
  }
  func.func @transform_1(%arg0: i32, %arg1: i32) -> (i32, i32, i32) {
    %c0_i32 = arith.constant 0 : i32
    %c0_i32_0 = arith.constant 0 : i32
    return %arg0, %arg1, %c0_i32 : i32, i32, i32
  }
  func.func @transform_2(%arg0: i32, %arg1: i32) -> (i32, i32, i32, i32) {
    %c0_i32 = arith.constant 0 : i32
    %c0_i32_0 = arith.constant 0 : i32
    %c0_i32_1 = arith.constant 0 : i32
    %c0_i32_2 = arith.constant 0 : i32
    return %arg0, %c0_i32, %c0_i32_0, %c0_i32_1 : i32, i32, i32, i32
  }
}

</mosaic_0001>

<llo_original>
// kernel: tpu_custom_call.1
$region0: #{tpu_custom_call.1}
  #allocation0 [shape = 'u32[]', space=smem, size = 0x4, offset = 0x4, fixed_abs, tag = 'smem constant byte address 0x4 - core index']
  #allocation1 [shape = 'u32[144,128]{1,0:T(1,128)}', space=vmem, size = 0x12000, scoped, tag = 'internal scratch']
  #allocation2 [shape = 'f32[4,8,128]{2,1,0:T(8,128)}', space=vmem, size = 0x4000, scoped, tag = 'scratch operand']
  %s0 = inlined_call_operand.hbm [shape: f32[2,8,128], index: 0, kind: input, shape index: {}]
  %s1 = inlined_call_operand.hbm [shape: f32[2,8,128], index: 1, kind: input, shape index: {}]
  %s2 = inlined_call_operand.hbm [shape: f32[2,4,8,128], index: 2, kind: output, shape index: {}]
  %s3 = sld [smem:[#allocation0]]
  $region57: #{tpu_custom_call.1} parent=0
    _
  %s5 = ssub.s32 1, %s3
  %s6 = scalar_select 0, %s5, %s3
  $region1: #{tpu_custom_call.1} parent=0
    #allocation3 [shape = 'u8[8192]{0}', space=vmem, size = 0x2000, scoped, tag = 'input window, operand 0']
    #allocation4 [shape = 's32[2]{0}', space=sflag, size = 0x8, scoped, tag = 'scoped memory for tpu_custom_call.1']
    #allocation5 [shape = 's32[2]{0}', space=sflag, size = 0x8, scoped, tag = 'scoped memory for tpu_custom_call.1']
    #allocation6 [shape = 'u8[8192]{0}', space=vmem, size = 0x2000, scoped, tag = 'input window, operand 1']
    #allocation7 [shape = 's32[2]{0}', space=sflag, size = 0x8, scoped, tag = 'scoped memory for tpu_custom_call.1']
    #allocation8 [shape = 'u8[32768]{0}', space=vmem, size = 0x8000, scoped, tag = 'output window, operand 0']
    %7 = vsyncpa [#allocation4], 0
    %s8 = scalar_lea.sflag [#allocation4], 1
    %9 = vsyncpa %s8, 0
    %10 = vsyncpa [#allocation7], 0
    %s11 = scalar_lea.sflag [#allocation7], 1
    %12 = vsyncpa %s11, 0
    %13 = vsyncpa [#allocation5], 0
    %s14 = scalar_lea.sflag [#allocation5], 1
    %15 = vsyncpa %s14, 0
    loop: start=0, step=1, limit=4
    $region2: #{tpu_custom_call.1} parent=1 // loop_pre_header
      _
    $region3: #{tpu_custom_call.1} parent=1 // loop_header
      %s17 = sphi 0, %s21
      %p18 = scmp.ge.s32.totalorder %s17, 4
      %s24 = sphi 0, %s36
      %s25 = sphi 0, %s32
      %s26 = sphi 0, %s24
      %s27 = sphi 0, %s25
      %s28 = sphi 0, %s26
      %s29 = sphi 0, %s27
      %s41 = sphi 0, %s43
      %s44 = sphi 0, %s41
      %s45 = sphi 0, %s44
      %s61 = sphi 0, %s45
      %s69 = sphi 0, %s71
      %s72 = sphi 0, %s69
      %s73 = sphi 0, %s72
      %s89 = sphi 0, %s73
      %s95 = sphi 0, %s97
      %s98 = sphi 0, %s95
      %s99 = sphi 0, %s98
      %s115 = sphi 0, %s99
    $region4: #{tpu_custom_call.1} parent=1 // loop_header_branch
      %20 = sbr.rel (%p18) target = $region8
    $region5: #{tpu_custom_call.1} parent=1 // loop_body
      %s22 = ssub.s32 %s17, 1
      %s23 = ssub.s32 %s17, 2
      %s30 = sadd.s32 1, %s25
      %p31 = scmp.ge.s32.totalorder %s30, 1
      %s32 = scalar_select %p31, 0, %s30
      %s33 = sadd.s32 1, %s24
      %s34 = scalar_select %p31, %s33, %s24
      %p35 = scmp.ge.s32.totalorder %s34, 2
      %s36 = scalar_select %p35, 0, %s34
      %s37 = ssub.s32 %s24, %s36
      %s38 = ssub.s32 %s25, %s32
      %s39 = sor.u32 %s37, %s38
      %p40 = scmp.eq.s32.totalorder %s39, 0
      %s42 = sadd.s32 %s41, 1
      %s43 = scalar_select %p40, %s41, %s42
      %p46 = pneg %p40
      %p47 = scmp.eq.s32.totalorder %s17, 1
      %p48 = por %p46, %p47
      %p49 = scmp.ne.s32.totalorder %s41, %s44
      %p50 = scmp.eq.s32.totalorder %s17, 0
      %p51 = por %p49, %p50
      %p52 = scmp.ne.s32.totalorder %s41, %s44
      %p53 = scmp.eq.s32.totalorder %s22, 1
      %p54 = por %p52, %p53
      %p55 = scmp.ne.s32.totalorder %s44, %s45
      %p56 = scmp.eq.s32.totalorder %s22, 0
      %p57 = por %p55, %p56
      %p58 = scmp.ne.s32.totalorder %s44, %s45
      %p59 = scmp.eq.s32.totalorder %s23, 1
      %p60 = por %p58, %p59
      %p62 = scmp.ne.s32.totalorder %s45, %s61
      %p63 = scmp.eq.s32.totalorder %s23, 0
      %p64 = por %p62, %p63
      %s65 = ssub.s32 %s24, %s36
      %s66 = ssub.s32 %s25, %s32
      %s67 = sor.u32 %s65, %s66
      %p68 = scmp.eq.s32.totalorder %s67, 0
      %s70 = sadd.s32 %s69, 1
      %s71 = scalar_select %p68, %s69, %s70
      %p74 = pneg %p68
      %p75 = scmp.eq.s32.totalorder %s17, 1
      %p76 = por %p74, %p75
      %p77 = scmp.ne.s32.totalorder %s69, %s72
      %p78 = scmp.eq.s32.totalorder %s17, 0
      %p79 = por %p77, %p78
      %p80 = scmp.ne.s32.totalorder %s69, %s72
      %p81 = scmp.eq.s32.totalorder %s22, 1
      %p82 = por %p80, %p81
      %p83 = scmp.ne.s32.totalorder %s72, %s73
      %p84 = scmp.eq.s32.totalorder %s22, 0
      %p85 = por %p83, %p84
      %p86 = scmp.ne.s32.totalorder %s72, %s73
      %p87 = scmp.eq.s32.totalorder %s23, 1
      %p88 = por %p86, %p87
      %p90 = scmp.ne.s32.totalorder %s73, %s89
      %p91 = scmp.eq.s32.totalorder %s23, 0
      %p92 = por %p90, %p91
      %s93 = ssub.s32 %s24, %s36
      %p94 = scmp.eq.s32.totalorder %s93, 0
      %s96 = sadd.s32 %s95, 1
      %s97 = scalar_select %p94, %s95, %s96
      %p100 = pneg %p94
      %p101 = scmp.eq.s32.totalorder %s17, 1
      %p102 = por %p100, %p101
      %p103 = scmp.ne.s32.totalorder %s95, %s98
      %p104 = scmp.eq.s32.totalorder %s17, 0
      %p105 = por %p103, %p104
      %p106 = scmp.ne.s32.totalorder %s95, %s98
      %p107 = scmp.eq.s32.totalorder %s22, 1
      %p108 = por %p106, %p107
      %p109 = scmp.ne.s32.totalorder %s98, %s99
      %p110 = scmp.eq.s32.totalorder %s22, 0
      %p111 = por %p109, %p110
      %p112 = scmp.ne.s32.totalorder %s98, %s99
      %p113 = scmp.eq.s32.totalorder %s23, 1
      %p114 = por %p112, %p113
      %p116 = scmp.ne.s32.totalorder %s99, %s115
      %p117 = scmp.eq.s32.totalorder %s23, 0
      %p118 = por %p116, %p117
      %p119 = scmp.le.s32.totalorder 1, %s17
      %p120 = scmp.lt.s32.totalorder %s17, 3
      %p121 = pnand %p119, %p120
      %p122 = pneg %p121
      // Predicated region
      $region9: #{tpu_custom_call.1} parent=5 // pred_check
        _
      $region10: #{tpu_custom_call.1} parent=5 // pred_check_branch
        %124 = sbr.rel (%p121) target = $region12
      $region11: #{tpu_custom_call.1} parent=5 // pred_region
        %s125 = ssub.s32 %s17, 1
      $region12: #{tpu_custom_call.1} parent=5 // pred_fallthru
        _
      %p126 = scmp.lt.s32.totalorder %s17, 2
      // Predicated region
      $region13: #{tpu_custom_call.1} parent=5 // pred_check
        %p127 = pneg %p126
      $region14: #{tpu_custom_call.1} parent=5 // pred_check_branch
        %129 = sbr.rel (%p127) target = $region16
      $region15: #{tpu_custom_call.1} parent=5 // pred_region
        // Predicated region
        $region17: #{tpu_custom_call.1} parent=15 // pred_check
          %p130 = pneg %p51
        $region18: #{tpu_custom_call.1} parent=15 // pred_check_branch
          %132 = sbr.rel (%p130) target = $region20
        $region19: #{tpu_custom_call.1} parent=15 // pred_region
          %s133 = sand.u32 %s41, 1
          %s134 = scalar_lea.sflag [#allocation4], %s133
          %s135 = sand.u32 %s41, 1
          %s136 = smul.addr %s135, 8
          %s137 = scalar_lea.vmem [#allocation3], %s136
          %s139 = ssub.s32 128, 128
          %140 = vsyncadd %s134, %s139
          %s141 = sadd.s32 %s25, %s24
          %s142 = smul.addr %s141, 128
          %s143 = scalar_lea.hbm %s0, %s142
          %s145 = sshll.u32 %s137, 4
          %s146 = int_to_ptr.vmem [resolvable:$true] %s145
          %148 = dma.hbm_to_vmem [thread:$0]  %s143, 128, %s146, %s134
        $region20: #{tpu_custom_call.1} parent=15 // pred_fallthru
          _
        // Predicated region
        $region21: #{tpu_custom_call.1} parent=15 // pred_check
          %p149 = pneg %p79
        $region22: #{tpu_custom_call.1} parent=15 // pred_check_branch
          %151 = sbr.rel (%p149) target = $region24
        $region23: #{tpu_custom_call.1} parent=15 // pred_region
          %s152 = sand.u32 %s69, 1
          %s153 = scalar_lea.sflag [#allocation7], %s152
          %s154 = sand.u32 %s69, 1
          %s155 = smul.addr %s154, 8
          %s156 = scalar_lea.vmem [#allocation6], %s155
          %s158 = ssub.s32 128, 128
          %159 = vsyncadd %s153, %s158
          %s160 = sadd.s32 %s25, %s24
          %s161 = smul.addr %s160, 128
          %s162 = scalar_lea.hbm %s1, %s161
          %s164 = sshll.u32 %s156, 4
          %s165 = int_to_ptr.vmem [resolvable:$true] %s164
          %167 = dma.hbm_to_vmem [thread:$0]  %s162, 128, %s165, %s153
        $region24: #{tpu_custom_call.1} parent=15 // pred_fallthru
          _
      $region16: #{tpu_custom_call.1} parent=5 // pred_fallthru
        _
      %p168 = scmp.le.s32.totalorder 1, %s17
      %p169 = scmp.lt.s32.totalorder %s17, 3
      %p170 = pnand %p168, %p169
      %p171 = pneg %p170
      // Predicated region
      $region25: #{tpu_custom_call.1} parent=5 // pred_check
        _
      $region26: #{tpu_custom_call.1} parent=5 // pred_check_branch
        %173 = sbr.rel (%p170) target = $region28
      $region27: #{tpu_custom_call.1} parent=5 // pred_region
        %s174 = ssub.s32 %s17, 1
        %s175 = sand.u32 %s44, 1
        %s176 = scalar_lea.sflag [#allocation4], %s175
        %s177 = sand.u32 %s44, 1
        %s178 = smul.addr %s177, 8
        %s179 = scalar_lea.vmem [#allocation3], %s178
        // Predicated region
        $region29: #{tpu_custom_call.1} parent=27 // pred_check
          %p180 = pneg %p57
        $region30: #{tpu_custom_call.1} parent=27 // pred_check_branch
          %182 = sbr.rel (%p180) target = $region32
        $region31: #{tpu_custom_call.1} parent=27 // pred_region
          %183 = dma.done %s176, 128
        $region32: #{tpu_custom_call.1} parent=27 // pred_fallthru
          _
        %s184 = sand.u32 %s72, 1
        %s185 = scalar_lea.sflag [#allocation7], %s184
        %s186 = sand.u32 %s72, 1
        %s187 = smul.addr %s186, 8
        %s188 = scalar_lea.vmem [#allocation6], %s187
        // Predicated region
        $region33: #{tpu_custom_call.1} parent=27 // pred_check
          %p189 = pneg %p85
        $region34: #{tpu_custom_call.1} parent=27 // pred_check_branch
          %191 = sbr.rel (%p189) target = $region36
        $region35: #{tpu_custom_call.1} parent=27 // pred_region
          %192 = dma.done %s185, 128
        $region36: #{tpu_custom_call.1} parent=27 // pred_fallthru
          _
        %s193 = sand.u32 %s44, 1
        %s194 = scalar_lea.sflag [#allocation4], %s193
        %s195 = sand.u32 %s44, 1
        %s196 = smul.addr %s195, 8
        %s197 = scalar_lea.vmem [#allocation3], %s196
        %p198 = pneg %p57
        %p199 = pneg %p54
        %s200 = sand.u32 %s72, 1
        %s201 = scalar_lea.sflag [#allocation7], %s200
        %s202 = sand.u32 %s72, 1
        %s203 = smul.addr %s202, 8
        %s204 = scalar_lea.vmem [#allocation6], %s203
        %p205 = pneg %p85
        %p206 = pneg %p82
        %p207 = pneg %p111
        %p208 = pneg %p108
        %s209 = sand.u32 %s98, 1
        %s210 = scalar_lea.sflag [#allocation5], %s209
        %s211 = sand.u32 %s98, 1
        %s212 = smul.addr %s211, 32
        %s213 = scalar_lea.vmem [#allocation8], %s212
        %p214 = scmp.eq.s32.totalorder %s27, 0
        // Predicated region
        $region37: #{tpu_custom_call.1} parent=27 // pred_check
          %p215 = pneg %p214
        $region38: #{tpu_custom_call.1} parent=27 // pred_check_branch
          %217 = sbr.rel (%p215) target = $region40
        $region39: #{tpu_custom_call.1} parent=27 // pred_region
          %218 = vst [vmem:[#allocation2] sm:$0xff] 0.0
          %219 = vst [vmem:[#allocation2 + $0x8] sm:$0xff] 0.0
          %220 = vst [vmem:[#allocation2 + $0x10] sm:$0xff] 0.0
          %221 = vst [vmem:[#allocation2 + $0x18] sm:$0xff] 0.0
        $region40: #{tpu_custom_call.1} parent=27 // pred_fallthru
          _
        %v222 = vld [vmem:[%s179] sm:$0xff]
        %v223 = vld [vmem:[%s188] sm:$0xff]
        %v224 = vmul.f32 %v222, %v223
        %v225 = vmax.f32 %v222, 0.0
        %v226 = vsub.f32 %v225, %v224
        %v227 = vand.u32 2147483647, %v222
        %v228 = vsub.f32 0.0, %v227
        %v229 = vmul.f32 %v228, 1.442695
        %v230 = vpow.pop %v229
        %v231 = vadd.f32 %v230, 1.0
        %v232 = vlog2.pop %v231
        %v233 = vmul.f32 %v232, 0.6931472
        %v234 = vmul.f32 -0.5, %v230
        %v235 = vadd.f32 %v234, 1.0
        %v236 = vmul.f32 %v235, %v230
        %v237 = vand.u32 2147483647, %v230
        %vm238 = vcmp.lt.f32.partialorder %v237, 0.0004427343
        %v239 = vsel %vm238, %v236, %v233
        %v240 = vadd.f32 %v226, %v239
        %v241 = vld [vmem:[#allocation2] sm:$0xff]
        %v242 = vadd.f32 %v240, 0.0
        %v243 = vadd.f32 %v241, %v242
        %244 = vst [vmem:[#allocation2] sm:$0xff] %v243
        %s245 = scalar_lea.vmem [#allocation2], 8
        %v246 = vld [vmem:[%s245] sm:$0xff]
        %v247 = vadd.f32 %v224, 0.0
        %v248 = vadd.f32 %v246, %v247
        %249 = vst [vmem:[%s245] sm:$0xff] %v248
        %s250 = scalar_lea.vmem [#allocation2], 16
        %v251 = vld [vmem:[%s250] sm:$0xff]
        %v252 = vadd.f32 %v222, 0.0
        %v253 = vadd.f32 %v251, %v252
        %254 = vst [vmem:[%s250] sm:$0xff] %v253
        %s255 = scalar_lea.vmem [#allocation2], 24
        %v256 = vld [vmem:[%s255] sm:$0xff]
        %v257 = vadd.f32 %v223, 0.0
        %v258 = vadd.f32 %v256, %v257
        %259 = vst [vmem:[%s255] sm:$0xff] %v258
        // Predicated region
        $region41: #{tpu_custom_call.1} parent=27 // pred_check
          %p260 = pneg %p214
        $region42: #{tpu_custom_call.1} parent=27 // pred_check_branch
          %262 = sbr.rel (%p260) target = $region44
        $region43: #{tpu_custom_call.1} parent=27 // pred_region
          %v263 = vld [vmem:[#allocation2] sm:$0xff]
          %v264 = vld [vmem:[#allocation2 + $0x8] sm:$0xff]
          %v265 = vld [vmem:[#allocation2 + $0x10] sm:$0xff]
          %v266 = vld [vmem:[#allocation2 + $0x18] sm:$0xff]
          %267 = vst [vmem:[%s213] sm:$0xff] %v263
          %268 = vst [vmem:[%s213 + $0x8] sm:$0xff] %v264
          %269 = vst [vmem:[%s213 + $0x10] sm:$0xff] %v265
          %270 = vst [vmem:[%s213 + $0x18] sm:$0xff] %v266
        $region44: #{tpu_custom_call.1} parent=27 // pred_fallthru
          _
        %s271 = sand.u32 %s98, 1
        %s272 = scalar_lea.sflag [#allocation5], %s271
        %s273 = sand.u32 %s98, 1
        %s274 = smul.addr %s273, 32
        %s275 = scalar_lea.vmem [#allocation8], %s274
        // Predicated region
        $region45: #{tpu_custom_call.1} parent=27 // pred_check
          %p276 = pneg %p108
        $region46: #{tpu_custom_call.1} parent=27 // pred_check_branch
          %278 = sbr.rel (%p276) target = $region48
        $region47: #{tpu_custom_call.1} parent=27 // pred_region
          %s280 = ssub.s32 512, 512
          %281 = vsyncadd %s272, %s280
          %s282 = smul.addr %s26, 4
          %s283 = smul.addr %s282, 128
          %s284 = scalar_lea.hbm %s2, %s283
          %s285 = sshll.u32 %s275, 4
          %s286 = int_to_ptr.vmem [resolvable:$true] %s285
          %291 = dma.vmem_to_hbm [thread:$0]  %s286, 512, %s284, %s272, 128, 128, 8
        $region48: #{tpu_custom_call.1} parent=27 // pred_fallthru
          _
      $region28: #{tpu_custom_call.1} parent=5 // pred_fallthru
        _
      %p292 = scmp.le.s32.totalorder 2, %s17
      // Predicated region
      $region49: #{tpu_custom_call.1} parent=5 // pred_check
        %p293 = pneg %p292
      $region50: #{tpu_custom_call.1} parent=5 // pred_check_branch
        %295 = sbr.rel (%p293) target = $region52
      $region51: #{tpu_custom_call.1} parent=5 // pred_region
        %s296 = ssub.s32 %s17, 2
        // Predicated region
        $region53: #{tpu_custom_call.1} parent=51 // pred_check
          %p297 = pneg %p114
        $region54: #{tpu_custom_call.1} parent=51 // pred_check_branch
          %299 = sbr.rel (%p297) target = $region56
        $region55: #{tpu_custom_call.1} parent=51 // pred_region
          %s300 = sand.u32 %s99, 1
          %s301 = scalar_lea.sflag [#allocation5], %s300
          %s302 = sand.u32 %s99, 1
          %s303 = smul.addr %s302, 32
          %s304 = scalar_lea.vmem [#allocation8], %s303
          %305 = dma.done %s301, 512
        $region56: #{tpu_custom_call.1} parent=51 // pred_fallthru
          _
      $region52: #{tpu_custom_call.1} parent=5 // pred_fallthru
        _
    $region6: #{tpu_custom_call.1} parent=1 // loop_footer
      %s21 = sadd.s32 1, %s17
    $region7: #{tpu_custom_call.1} parent=1 // loop_footer_branch
      %16 = sbr.rel target = $region3
    $region8: #{tpu_custom_call.1} parent=1 // loop_exit
      _
    %306 = vsyncpa [#allocation4], 1
    %s307 = scalar_lea.sflag [#allocation4], 1
    %308 = vsyncpa %s307, 1
    %309 = vsyncpa [#allocation7], 1
    %s310 = scalar_lea.sflag [#allocation7], 1
    %311 = vsyncpa %s310, 1
    %312 = vsyncpa [#allocation5], 1
    %s313 = scalar_lea.sflag [#allocation5], 1
    %314 = vsyncpa %s313, 1

</llo_original>
